<compile_context>
chip_gen: v7x
topology: tpu7x:2x2x1
jax: 0.10.0
libtpu: 0.0.40
codegen_flags: <defaults>
</compile_context>

<pallas_src>
import math
import functools

import jax
import jax.numpy as jnp
from jax.experimental import pallas as pl
from jax.experimental.pallas import tpu as pltpu


_VMEM_LIMIT_BYTES = 48 * 1024 * 1024   # fits v7x (64 MiB physical) and v5e/v6e (128 MiB)
_TARGET_TILE_BYTES = 4 << 20           # ~4 MiB per streamed buffer


def _build_pe_table(max_len: int, d_model: int) -> jnp.ndarray:
    """Deterministic sin/cos positional-encoding buffer, shape (max_len, d_model)."""
    position = jnp.arange(max_len, dtype=jnp.float32)[:, None]              # (L, 1)
    div_term = jnp.exp(
        jnp.arange(0, d_model, 2, dtype=jnp.float32) * (-math.log(10000.0) / d_model)
    )                                                                        # (D/2,)
    pe = jnp.zeros((max_len, d_model), dtype=jnp.float32)
    pe = pe.at[:, 0::2].set(jnp.sin(position * div_term))
    pe = pe.at[:, 1::2].set(jnp.cos(position * div_term))
    return pe                                                                # (L, D)


# ----------------------------- tile selection --------------------------------

def _choose_seq_tile_sbd(S: int, B: int, D: int, itemsize: int) -> int:
    """Leading-dim (sequence) tile for the (S, B, D) kernel: ~4 MiB per buffer."""
    row_bytes = max(B * D * itemsize, 1)
    cap = max(1, min(S, _TARGET_TILE_BYTES // row_bytes))
    # Prefer a tile that divides S (avoids a masked partial last tile).
    for t in range(cap, max(cap - 64, 0), -1):
        if S % t == 0:
            return t
    return cap


def _choose_tiles_bsd(S: int, B: int, D: int, itemsize: int) -> tuple[int, int]:
    """(batch_block, seq_tile) for the (B, S, D) kernel."""
    sub_mult = max(8, 32 // itemsize)          # 8 for f32, 16 for bf16, 32 for int8/fp8
    row_bytes = max(D * itemsize, 1)
    cap = max(1, _TARGET_TILE_BYTES // row_bytes)
    if S <= sub_mult:
        tile_rows = S
    else:
        tile_rows = min(S, max(sub_mult, (cap // sub_mult) * sub_mult))
        for t in range(tile_rows, sub_mult - 1, -sub_mult):
            if S % t == 0:
                tile_rows = t
                break
    # If the whole per-batch sequence slab is small, block the batch dim too so the
    # fixed per-grid-step overhead is amortized (small-S workloads are otherwise
    # grid-overhead-bound, not HBM-bound).
    slab_bytes = tile_rows * D * itemsize
    b_blk = 1
    if tile_rows >= S and slab_bytes < (1 << 20):
        b_blk = max(1, min(B, (2 << 20) // max(slab_bytes, 1)))
        for t in range(b_blk, 0, -1):
            if B % t == 0:
                b_blk = t
                break
    return b_blk, tile_rows


# -------------------------------- kernels -------------------------------------

def _pos_enc_sbd_kernel(x_ref, pe_ref, o_ref, *, scale):
    # x_ref : (tile_s, B, D)  — batch on sublanes, d_model on lanes.
    # pe_ref: (tile_s, 1, D)  — broadcast over batch sublanes (VPU replication).
    x = x_ref[...].astype(jnp.float32)
    pe = pe_ref[...].astype(jnp.float32)
    o_ref[...] = (x * scale + pe).astype(o_ref.dtype)


def _pos_enc_bsd_kernel(x_ref, pe_ref, o_ref, *, scale):
    # x_ref : (Bblk, tile_rows, D) — sequence on sublanes, d_model on lanes.
    # pe_ref: (tile_rows, D)       — broadcast over the leading batch dim (free).
    x = x_ref[...].astype(jnp.float32)
    pe = pe_ref[...].astype(jnp.float32)
    o_ref[...] = (x * scale + pe[None, :, :]).astype(o_ref.dtype)


# -------------------------------- wrappers -------------------------------------

def positional_encoding(x_sbd: jnp.ndarray, pe_table: jnp.ndarray,
                        *, tile_s: int | None = None,
                        donate_x: bool = False) -> jnp.ndarray:
    """Native PyTorch-layout forward: x (S, B, D) -> x*sqrt(D) + pe[:S] (eval dropout)."""
    S, B, D = x_sbd.shape
    itemsize = jnp.dtype(x_sbd.dtype).itemsize
    # Stream pe in x.dtype (halves HBM/VMEM bytes for bf16 activations); (S, 1, D)
    # matches the module's registered buffer and gives a clean sublane broadcast.
    pe_slab = pe_table[:S].astype(x_sbd.dtype).reshape(S, 1, D)

    if tile_s is None:
        tile_s = _choose_seq_tile_sbd(S, B, D, itemsize)
    n_s = pl.cdiv(S, tile_s)

    kernel = functools.partial(_pos_enc_sbd_kernel, scale=math.sqrt(D))
    return pl.pallas_call(
        kernel,
        out_shape=jax.ShapeDtypeStruct((S, B, D), x_sbd.dtype),
        grid=(n_s,),
        in_specs=[
            pl.BlockSpec((tile_s, B, D), lambda i: (i, 0, 0)),
            pl.BlockSpec((tile_s, 1, D), lambda i: (i, 0, 0)),
        ],
        out_specs=pl.BlockSpec((tile_s, B, D), lambda i: (i, 0, 0)),
        # Only alias when the caller actually donates x; otherwise XLA inserts a copy.
        input_output_aliases={0: 0} if donate_x else {},
        compiler_params=pltpu.CompilerParams(
            dimension_semantics=("parallel",),
            vmem_limit_bytes=_VMEM_LIMIT_BYTES,
        ),
    )(x_sbd, pe_slab)


def positional_encoding_bsd(x_bsd: jnp.ndarray, pe_table: jnp.ndarray,
                            *, tiles: tuple[int, int] | None = None,
                            donate_x: bool = False) -> jnp.ndarray:
    """Batch-major helper: x (B, S, D) -> x*sqrt(D) + pe[:S] (eval dropout)."""
    B, S, D = x_bsd.shape
    itemsize = jnp.dtype(x_bsd.dtype).itemsize
    pe_slab = pe_table[:S].astype(x_bsd.dtype)                    # (S, D), x.dtype

    if tiles is None:
        b_blk, tile_rows = _choose_tiles_bsd(S, B, D, itemsize)
    else:
        b_blk, tile_rows = tiles
    n_seq = pl.cdiv(S, tile_rows)
    n_b = pl.cdiv(B, b_blk)

    kernel = functools.partial(_pos_enc_bsd_kernel, scale=math.sqrt(D))
    return pl.pallas_call(
        kernel,
        out_shape=jax.ShapeDtypeStruct((B, S, D), x_bsd.dtype),
        # Batch innermost: the pe block index (i, 0) is unchanged across consecutive
        # steps, so Pallas skips the re-DMA — pe is fetched once per sequence tile.
        grid=(n_seq, n_b),
        in_specs=[
            pl.BlockSpec((b_blk, tile_rows, D), lambda i, b: (b, i, 0)),
            pl.BlockSpec((tile_rows, D), lambda i, b: (i, 0)),
        ],
        out_specs=pl.BlockSpec((b_blk, tile_rows, D), lambda i, b: (b, i, 0)),
        input_output_aliases={0: 0} if donate_x else {},
        compiler_params=pltpu.CompilerParams(
            dimension_semantics=("parallel", "parallel"),
            vmem_limit_bytes=_VMEM_LIMIT_BYTES,
        ),
    )(x_bsd, pe_slab)


if __name__ == "__main__":
    d_model = 128
    max_len = 512       # small synthetic max_len (module default is 5000)
    seq_len = 64
    batch = 4

    pe = _build_pe_table(max_len, d_model)                       # (max_len, d_model)

    key = jax.random.PRNGKey(0)
    x_sbd = jax.random.normal(key, (seq_len, batch, d_model), dtype=jnp.float32)

    # Plain-JAX reference (eval-mode dropout == identity).
    ref_sbd = x_sbd * math.sqrt(d_model) + pe[:seq_len][:, None, :]

    # Native PyTorch-layout kernel (no transposes).
    out_sbd = jax.block_until_ready(positional_encoding(x_sbd, pe))
    assert out_sbd.shape == (seq_len, batch, d_model)
    assert jnp.allclose(out_sbd, ref_sbd, atol=1e-5, rtol=1e-5)

    # Batch-major helper (recommended path when activations are already (B, S, D)).
    x_bsd = jnp.transpose(x_sbd, (1, 0, 2))
    ref_bsd = jnp.transpose(ref_sbd, (1, 0, 2))
    out_bsd = jax.block_until_ready(positional_encoding_bsd(x_bsd, pe))
    assert out_bsd.shape == (batch, seq_len, d_model)
    assert jnp.allclose(out_bsd, ref_bsd, atol=1e-5, rtol=1e-5)

    print("KERNEL_OK")
</pallas_src>

<mosaic_0001>
module attributes {stable_mosaic.version = 11 : i64} {
  func.func @_pos_enc_sbd_kernel(%arg0: i32, %arg1: memref<64x4x128xf32, #tpu.memory_space<vmem>>, %arg2: memref<64x1x128xf32, #tpu.memory_space<vmem>>, %arg3: memref<64x4x128xf32, #tpu.memory_space<vmem>>) attributes {dimension_semantics = [#tpu.dimension_semantics<parallel>], iteration_bounds = array<i64: 1>, scalar_prefetch = 0 : i64, scratch_operands = 0 : i64, tpu.core_type = #tpu.core_type<tc>, window_params = [{transform_indices = @transform_0, window_bounds = array<i64: 64, 4, 128>}, {transform_indices = @transform_1, window_bounds = array<i64: 64, 1, 128>}, {transform_indices = @transform_2, window_bounds = array<i64: 64, 4, 128>}]} {
    %c0 = arith.constant 0 : index
    %c0_0 = arith.constant 0 : index
    %c0_1 = arith.constant 0 : index
    %0 = vector.load %arg1[%c0, %c0_0, %c0_1] : memref<64x4x128xf32, #tpu.memory_space<vmem>>, vector<64x4x128xf32>
    %c0_2 = arith.constant 0 : index
    %c0_3 = arith.constant 0 : index
    %c0_4 = arith.constant 0 : index
    %1 = vector.load %arg2[%c0_2, %c0_3, %c0_4] : memref<64x1x128xf32, #tpu.memory_space<vmem>>, vector<64x1x128xf32>
    %cst = arith.constant 11.3137083 : f32
    %2 = vector.broadcast %cst : f32 to vector<64x4x128xf32>
    %3 = arith.mulf %0, %2 : vector<64x4x128xf32>
    %4 = vector.broadcast %1 : vector<64x1x128xf32> to vector<64x4x128xf32>
    %5 = arith.addf %3, %4 : vector<64x4x128xf32>
    %c0_5 = arith.constant 0 : index
    %c0_6 = arith.constant 0 : index
    %c0_7 = arith.constant 0 : index
    %6 = vector.load %arg3[%c0_5, %c0_6, %c0_7] : memref<64x4x128xf32, #tpu.memory_space<vmem>>, vector<64x4x128xf32>
    tpu.vector_store %arg3[%c0_5, %c0_6, %c0_7], %5 {strides = array<i32>} : memref<64x4x128xf32, #tpu.memory_space<vmem>>, vector<64x4x128xf32>,
    return
  }
  func.func @transform_0(%arg0: i32) -> (i32, i32, i32) {
    %c0_i32 = arith.constant 0 : i32
    %c0_i32_0 = arith.constant 0 : i32
    %c0_i32_1 = arith.constant 0 : i32
    return %arg0, %c0_i32, %c0_i32_0 : i32, i32, i32
  }
  func.func @transform_1(%arg0: i32) -> (i32, i32, i32) {
    %c0_i32 = arith.constant 0 : i32
    %c0_i32_0 = arith.constant 0 : i32
    %c0_i32_1 = arith.constant 0 : i32
    return %arg0, %c0_i32, %c0_i32_0 : i32, i32, i32
  }
  func.func @transform_2(%arg0: i32) -> (i32, i32, i32) {
    %c0_i32 = arith.constant 0 : i32
    %c0_i32_0 = arith.constant 0 : i32
    %c0_i32_1 = arith.constant 0 : i32
    return %arg0, %c0_i32, %c0_i32_0 : i32, i32, i32
  }
}

</mosaic_0001>

<llo_original>
// kernel: tpu_custom_call.1
$region0: #{tpu_custom_call.1}
  #allocation0 [shape = 'u32[]', space=smem, size = 0x4, offset = 0x4, fixed_abs, tag = 'smem constant byte address 0x4 - core index']
  #allocation1 [shape = 'u32[144,128]{1,0:T(1,128)}', space=vmem, size = 0x12000, scoped, tag = 'internal scratch']
  %s0 = inlined_call_operand.hbm [shape: f32[64,4,128], index: 0, kind: input, shape index: {}]
  %s1 = inlined_call_operand.hbm [shape: f32[64,1,128], index: 1, kind: input, shape index: {}]
  %s2 = inlined_call_operand.hbm [shape: f32[64,4,128], index: 2, kind: output, shape index: {}]
  %s3 = sld [smem:[#allocation0]]
  $region26: #{tpu_custom_call.1} parent=0
    _
  %s5 = ssub.s32 1, %s3
  %s6 = scalar_select 0, %s5, %s3
  $region1: #{tpu_custom_call.1} parent=0
    #allocation2 [shape = 'u8[131072]{0}', space=vmem, size = 0x20000, scoped, tag = 'input window, operand 0, single buffered']
    #allocation3 [shape = 's32[1]{0}', space=sflag, size = 0x4, scoped, tag = 'scoped memory for tpu_custom_call.1']
    #allocation4 [shape = 's32[1]{0}', space=sflag, size = 0x4, scoped, tag = 'scoped memory for tpu_custom_call.1']
    #allocation5 [shape = 'u8[32768]{0}', space=vmem, size = 0x8000, scoped, tag = 'input window, operand 1, single buffered']
    #allocation6 [shape = 's32[1]{0}', space=sflag, size = 0x4, scoped, tag = 'scoped memory for tpu_custom_call.1']
    #allocation7 [shape = 'u8[131072]{0}', space=vmem, size = 0x20000, scoped, tag = 'output window, operand 0, single buffered']
    %7 = vsyncpa [#allocation3], 0
    %8 = vsyncpa [#allocation6], 0
    %9 = vsyncpa [#allocation4], 0
    // Predicated region
    $region2: #{tpu_custom_call.1} parent=1 // pred_check
      _
    $region3: #{tpu_custom_call.1} parent=1 // pred_check_branch
      %11 = sbr.rel (0) target = $region5
    $region4: #{tpu_custom_call.1} parent=1 // pred_region
      %s13 = ssub.s32 4096, 4096
      %14 = vsyncadd [#allocation3], %s13
      %s15 = sshll.u32 [#allocation2], 4
      %s16 = int_to_ptr.vmem [resolvable:$true] %s15
      %21 = dma.hbm_to_vmem [thread:$0]  %s0, 4096, %s16, [#allocation3], 64, 64, 4
    $region5: #{tpu_custom_call.1} parent=1 // pred_fallthru
      _
    // Predicated region
    $region6: #{tpu_custom_call.1} parent=1 // pred_check
      _
    $region7: #{tpu_custom_call.1} parent=1 // pred_check_branch
      %23 = sbr.rel (0) target = $region9
    $region8: #{tpu_custom_call.1} parent=1 // pred_region
      %s25 = ssub.s32 1024, 1024
      %26 = vsyncadd [#allocation6], %s25
      %s27 = sshll.u32 [#allocation5], 4
      %s28 = int_to_ptr.vmem [resolvable:$true] %s27
      %33 = dma.hbm_to_vmem [thread:$0]  %s1, 1024, %s28, [#allocation6], 16, 16, 1
    $region9: #{tpu_custom_call.1} parent=1 // pred_fallthru
      _
    // Predicated region
    $region10: #{tpu_custom_call.1} parent=1 // pred_check
      _
    $region11: #{tpu_custom_call.1} parent=1 // pred_check_branch
      %35 = sbr.rel (0) target = $region13
    $region12: #{tpu_custom_call.1} parent=1 // pred_region
      %36 = dma.done [#allocation3], 4096
    $region13: #{tpu_custom_call.1} parent=1 // pred_fallthru
      _
    // Predicated region
    $region14: #{tpu_custom_call.1} parent=1 // pred_check
      _
    $region15: #{tpu_custom_call.1} parent=1 // pred_check_branch
      %38 = sbr.rel (0) target = $region17
    $region16: #{tpu_custom_call.1} parent=1 // pred_region
      %39 = dma.done [#allocation6], 1024
    $region17: #{tpu_custom_call.1} parent=1 // pred_fallthru
      _
    %v40 = vld [vmem:[#allocation2] sm:$0xf]
    %v41 = vld [vmem:[#allocation2 + $0x4] sm:$0xf]
    %v42 = vld [vmem:[#allocation2 + $0x8] sm:$0xf]
    %v43 = vld [vmem:[#allocation2 + $0xc] sm:$0xf]
    %v44 = vld [vmem:[#allocation2 + $0x10] sm:$0xf]
    %v45 = vld [vmem:[#allocation2 + $0x14] sm:$0xf]
    %v46 = vld [vmem:[#allocation2 + $0x18] sm:$0xf]
    %v47 = vld [vmem:[#allocation2 + $0x1c] sm:$0xf]
    %v48 = vld [vmem:[#allocation2 + $0x20] sm:$0xf]
    %v49 = vld [vmem:[#allocation2 + $0x24] sm:$0xf]
    %v50 = vld [vmem:[#allocation2 + $0x28] sm:$0xf]
    %v51 = vld [vmem:[#allocation2 + $0x2c] sm:$0xf]
    %v52 = vld [vmem:[#allocation2 + $0x30] sm:$0xf]
    %v53 = vld [vmem:[#allocation2 + $0x34] sm:$0xf]
    %v54 = vld [vmem:[#allocation2 + $0x38] sm:$0xf]
    %v55 = vld [vmem:[#allocation2 + $0x3c] sm:$0xf]
    %v56 = vld [vmem:[#allocation2 + $0x40] sm:$0xf]
    %v57 = vld [vmem:[#allocation2 + $0x44] sm:$0xf]
    %v58 = vld [vmem:[#allocation2 + $0x48] sm:$0xf]
    %v59 = vld [vmem:[#allocation2 + $0x4c] sm:$0xf]
    %v60 = vld [vmem:[#allocation2 + $0x50] sm:$0xf]
    %v61 = vld [vmem:[#allocation2 + $0x54] sm:$0xf]
    %v62 = vld [vmem:[#allocation2 + $0x58] sm:$0xf]
    %v63 = vld [vmem:[#allocation2 + $0x5c] sm:$0xf]
    %v64 = vld [vmem:[#allocation2 + $0x60] sm:$0xf]
    %v65 = vld [vmem:[#allocation2 + $0x64] sm:$0xf]
    %v66 = vld [vmem:[#allocation2 + $0x68] sm:$0xf]
    %v67 = vld [vmem:[#allocation2 + $0x6c] sm:$0xf]
    %v68 = vld [vmem:[#allocation2 + $0x70] sm:$0xf]
    %v69 = vld [vmem:[#allocation2 + $0x74] sm:$0xf]
    %v70 = vld [vmem:[#allocation2 + $0x78] sm:$0xf]
    %v71 = vld [vmem:[#allocation2 + $0x7c] sm:$0xf]
    %v72 = vld [vmem:[#allocation2 + $0x80] sm:$0xf]
    %v73 = vld [vmem:[#allocation2 + $0x84] sm:$0xf]
    %v74 = vld [vmem:[#allocation2 + $0x88] sm:$0xf]
    %v75 = vld [vmem:[#allocation2 + $0x8c] sm:$0xf]
    %v76 = vld [vmem:[#allocation2 + $0x90] sm:$0xf]
    %v77 = vld [vmem:[#allocation2 + $0x94] sm:$0xf]
    %v78 = vld [vmem:[#allocation2 + $0x98] sm:$0xf]
    %v79 = vld [vmem:[#allocation2 + $0x9c] sm:$0xf]
    %v80 = vld [vmem:[#allocation2 + $0xa0] sm:$0xf]
    %v81 = vld [vmem:[#allocation2 + $0xa4] sm:$0xf]
    %v82 = vld [vmem:[#allocation2 + $0xa8] sm:$0xf]
    %v83 = vld [vmem:[#allocation2 + $0xac] sm:$0xf]
    %v84 = vld [vmem:[#allocation2 + $0xb0] sm:$0xf]
    %v85 = vld [vmem:[#allocation2 + $0xb4] sm:$0xf]
    %v86 = vld [vmem:[#allocation2 + $0xb8] sm:$0xf]
    %v87 = vld [vmem:[#allocation2 + $0xbc] sm:$0xf]
    %v88 = vld [vmem:[#allocation2 + $0xc0] sm:$0xf]
    %v89 = vld [vmem:[#allocation2 + $0xc4] sm:$0xf]
    %v90 = vld [vmem:[#allocation2 + $0xc8] sm:$0xf]
    %v91 = vld [vmem:[#allocation2 + $0xcc] sm:$0xf]
    %v92 = vld [vmem:[#allocation2 + $0xd0] sm:$0xf]
    %v93 = vld [vmem:[#allocation2 + $0xd4] sm:$0xf]
    %v94 = vld [vmem:[#allocation2 + $0xd8] sm:$0xf]
    %v95 = vld [vmem:[#allocation2 + $0xdc] sm:$0xf]
    %v96 = vld [vmem:[#allocation2 + $0xe0] sm:$0xf]
    %v97 = vld [vmem:[#allocation2 + $0xe4] sm:$0xf]
    %v98 = vld [vmem:[#allocation2 + $0xe8] sm:$0xf]
    %v99 = vld [vmem:[#allocation2 + $0xec] sm:$0xf]
    %v100 = vld [vmem:[#allocation2 + $0xf0] sm:$0xf]
    %v101 = vld [vmem:[#allocation2 + $0xf4] sm:$0xf]
    %v102 = vld [vmem:[#allocation2 + $0xf8] sm:$0xf]
    %v103 = vld [vmem:[#allocation2 + $0xfc] sm:$0xf]
    %v104 = vld [vmem:[#allocation5] sm:$0x1]
    %v105 = vld [vmem:[#allocation5 + $0x1] sm:$0x1]
    %v106 = vld [vmem:[#allocation5 + $0x2] sm:$0x1]
    %v107 = vld [vmem:[#allocation5 + $0x3] sm:$0x1]
    %v108 = vld [vmem:[#allocation5 + $0x4] sm:$0x1]
    %v109 = vld [vmem:[#allocation5 + $0x5] sm:$0x1]
    %v110 = vld [vmem:[#allocation5 + $0x6] sm:$0x1]
    %v111 = vld [vmem:[#allocation5 + $0x7] sm:$0x1]
    %v112 = vld [vmem:[#allocation5 + $0x8] sm:$0x1]
    %v113 = vld [vmem:[#allocation5 + $0x9] sm:$0x1]
    %v114 = vld [vmem:[#allocation5 + $0xa] sm:$0x1]
    %v115 = vld [vmem:[#allocation5 + $0xb] sm:$0x1]
    %v116 = vld [vmem:[#allocation5 + $0xc] sm:$0x1]
    %v117 = vld [vmem:[#allocation5 + $0xd] sm:$0x1]
    %v118 = vld [vmem:[#allocation5 + $0xe] sm:$0x1]
    %v119 = vld [vmem:[#allocation5 + $0xf] sm:$0x1]
    %v120 = vld [vmem:[#allocation5 + $0x10] sm:$0x1]
    %v121 = vld [vmem:[#allocation5 + $0x11] sm:$0x1]
    %v122 = vld [vmem:[#allocation5 + $0x12] sm:$0x1]
    %v123 = vld [vmem:[#allocation5 + $0x13] sm:$0x1]
    %v124 = vld [vmem:[#allocation5 + $0x14] sm:$0x1]
    %v125 = vld [vmem:[#allocation5 + $0x15] sm:$0x1]
    %v126 = vld [vmem:[#allocation5 + $0x16] sm:$0x1]
    %v127 = vld [vmem:[#allocation5 + $0x17] sm:$0x1]
    %v128 = vld [vmem:[#allocation5 + $0x18] sm:$0x1]
    %v129 = vld [vmem:[#allocation5 + $0x19] sm:$0x1]
    %v130 = vld [vmem:[#allocation5 + $0x1a] sm:$0x1]
    %v131 = vld [vmem:[#allocation5 + $0x1b] sm:$0x1]
    %v132 = vld [vmem:[#allocation5 + $0x1c] sm:$0x1]
    %v133 = vld [vmem:[#allocation5 + $0x1d] sm:$0x1]
    %v134 = vld [vmem:[#allocation5 + $0x1e] sm:$0x1]
    %v135 = vld [vmem:[#allocation5 + $0x1f] sm:$0x1]
    %v136 = vld [vmem:[#allocation5 + $0x20] sm:$0x1]
    %v137 = vld [vmem:[#allocation5 + $0x21] sm:$0x1]
    %v138 = vld [vmem:[#allocation5 + $0x22] sm:$0x1]
    %v139 = vld [vmem:[#allocation5 + $0x23] sm:$0x1]
    %v140 = vld [vmem:[#allocation5 + $0x24] sm:$0x1]
    %v141 = vld [vmem:[#allocation5 + $0x25] sm:$0x1]
    %v142 = vld [vmem:[#allocation5 + $0x26] sm:$0x1]
    %v143 = vld [vmem:[#allocation5 + $0x27] sm:$0x1]
    %v144 = vld [vmem:[#allocation5 + $0x28] sm:$0x1]
    %v145 = vld [vmem:[#allocation5 + $0x29] sm:$0x1]
    %v146 = vld [vmem:[#allocation5 + $0x2a] sm:$0x1]
    %v147 = vld [vmem:[#allocation5 + $0x2b] sm:$0x1]
    %v148 = vld [vmem:[#allocation5 + $0x2c] sm:$0x1]
    %v149 = vld [vmem:[#allocation5 + $0x2d] sm:$0x1]
    %v150 = vld [vmem:[#allocation5 + $0x2e] sm:$0x1]
    %v151 = vld [vmem:[#allocation5 + $0x2f] sm:$0x1]
    %v152 = vld [vmem:[#allocation5 + $0x30] sm:$0x1]
    %v153 = vld [vmem:[#allocation5 + $0x31] sm:$0x1]
    %v154 = vld [vmem:[#allocation5 + $0x32] sm:$0x1]
    %v155 = vld [vmem:[#allocation5 + $0x33] sm:$0x1]
    %v156 = vld [vmem:[#allocation5 + $0x34] sm:$0x1]
    %v157 = vld [vmem:[#allocation5 + $0x35] sm:$0x1]
    %v158 = vld [vmem:[#allocation5 + $0x36] sm:$0x1]
    %v159 = vld [vmem:[#allocation5 + $0x37] sm:$0x1]
    %v160 = vld [vmem:[#allocation5 + $0x38] sm:$0x1]
    %v161 = vld [vmem:[#allocation5 + $0x39] sm:$0x1]
    %v162 = vld [vmem:[#allocation5 + $0x3a] sm:$0x1]
    %v163 = vld [vmem:[#allocation5 + $0x3b] sm:$0x1]
    %v164 = vld [vmem:[#allocation5 + $0x3c] sm:$0x1]
    %v165 = vld [vmem:[#allocation5 + $0x3d] sm:$0x1]
    %v166 = vld [vmem:[#allocation5 + $0x3e] sm:$0x1]
    %v167 = vld [vmem:[#allocation5 + $0x3f] sm:$0x1]
    %v168 = vmul.f32 %v40, 11.313708
    %v169 = vmul.f32 %v41, 11.313708
    %v170 = vmul.f32 %v42, 11.313708
    %v171 = vmul.f32 %v43, 11.313708
    %v172 = vmul.f32 %v44, 11.313708
    %v173 = vmul.f32 %v45, 11.313708
    %v174 = vmul.f32 %v46, 11.313708
    %v175 = vmul.f32 %v47, 11.313708
    %v176 = vmul.f32 %v48, 11.313708
    %v177 = vmul.f32 %v49, 11.313708
    %v178 = vmul.f32 %v50, 11.313708
    %v179 = vmul.f32 %v51, 11.313708
    %v180 = vmul.f32 %v52, 11.313708
    %v181 = vmul.f32 %v53, 11.313708
    %v182 = vmul.f32 %v54, 11.313708
    %v183 = vmul.f32 %v55, 11.313708
    %v184 = vmul.f32 %v56, 11.313708
    %v185 = vmul.f32 %v57, 11.313708
    %v186 = vmul.f32 %v58, 11.313708
    %v187 = vmul.f32 %v59, 11.313708
    %v188 = vmul.f32 %v60, 11.313708
    %v189 = vmul.f32 %v61, 11.313708
    %v190 = vmul.f32 %v62, 11.313708
    %v191 = vmul.f32 %v63, 11.313708
    %v192 = vmul.f32 %v64, 11.313708
    %v193 = vmul.f32 %v65, 11.313708
    %v194 = vmul.f32 %v66, 11.313708
    %v195 = vmul.f32 %v67, 11.313708
    %v196 = vmul.f32 %v68, 11.313708
    %v197 = vmul.f32 %v69, 11.313708
    %v198 = vmul.f32 %v70, 11.313708
    %v199 = vmul.f32 %v71, 11.313708
    %v200 = vmul.f32 %v72, 11.313708
    %v201 = vmul.f32 %v73, 11.313708
    %v202 = vmul.f32 %v74, 11.313708
    %v203 = vmul.f32 %v75, 11.313708
    %v204 = vmul.f32 %v76, 11.313708
    %v205 = vmul.f32 %v77, 11.313708
    %v206 = vmul.f32 %v78, 11.313708
    %v207 = vmul.f32 %v79, 11.313708
    %v208 = vmul.f32 %v80, 11.313708
    %v209 = vmul.f32 %v81, 11.313708
    %v210 = vmul.f32 %v82, 11.313708
    %v211 = vmul.f32 %v83, 11.313708
    %v212 = vmul.f32 %v84, 11.313708
    %v213 = vmul.f32 %v85, 11.313708
    %v214 = vmul.f32 %v86, 11.313708
    %v215 = vmul.f32 %v87, 11.313708
    %v216 = vmul.f32 %v88, 11.313708
    %v217 = vmul.f32 %v89, 11.313708
    %v218 = vmul.f32 %v90, 11.313708
    %v219 = vmul.f32 %v91, 11.313708
    %v220 = vmul.f32 %v92, 11.313708
    %v221 = vmul.f32 %v93, 11.313708
    %v222 = vmul.f32 %v94, 11.313708
    %v223 = vmul.f32 %v95, 11.313708
    %v224 = vmul.f32 %v96, 11.313708
    %v225 = vmul.f32 %v97, 11.313708
    %v226 = vmul.f32 %v98, 11.313708
    %v227 = vmul.f32 %v99, 11.313708
    %v228 = vmul.f32 %v100, 11.313708
    %v229 = vmul.f32 %v101, 11.313708
    %v230 = vmul.f32 %v102, 11.313708
    %v231 = vmul.f32 %v103, 11.313708
    %v296 = vlaneseq
    %v297 = vshrl.u32 %v296, 7
    %v298 = vsub.s32 0, %v297
    %v299 = vrot.slane %v104, %v298
    %v300 = vlaneseq
    %v301 = vshrl.u32 %v300, 7
    %v302 = vsub.s32 0, %v301
    %v303 = vrot.slane %v105, %v302
    %v304 = vlaneseq
    %v305 = vshrl.u32 %v304, 7
    %v306 = vsub.s32 0, %v305
    %v307 = vrot.slane %v106, %v306
    %v308 = vlaneseq
    %v309 = vshrl.u32 %v308, 7
    %v310 = vsub.s32 0, %v309
    %v311 = vrot.slane %v107, %v310
    %v312 = vlaneseq
    %v313 = vshrl.u32 %v312, 7
    %v314 = vsub.s32 0, %v313
    %v315 = vrot.slane %v108, %v314
    %v316 = vlaneseq
    %v317 = vshrl.u32 %v316, 7
    %v318 = vsub.s32 0, %v317
    %v319 = vrot.slane %v109, %v318
    %v320 = vlaneseq
    %v321 = vshrl.u32 %v320, 7
    %v322 = vsub.s32 0, %v321
    %v323 = vrot.slane %v110, %v322
    %v324 = vlaneseq
    %v325 = vshrl.u32 %v324, 7
    %v326 = vsub.s32 0, %v325
    %v327 = vrot.slane %v111, %v326
    %v328 = vlaneseq
    %v329 = vshrl.u32 %v328, 7
    %v330 = vsub.s32 0, %v329
    %v331 = vrot.slane %v112, %v330
    %v332 = vlaneseq
    %v333 = vshrl.u32 %v332, 7
    %v334 = vsub.s32 0, %v333
    %v335 = vrot.slane %v113, %v334
    %v336 = vlaneseq
    %v337 = vshrl.u32 %v336, 7
    %v338 = vsub.s32 0, %v337
    %v339 = vrot.slane %v114, %v338
    %v340 = vlaneseq
    %v341 = vshrl.u32 %v340, 7
    %v342 = vsub.s32 0, %v341
    %v343 = vrot.slane %v115, %v342
    %v344 = vlaneseq
    %v345 = vshrl.u32 %v344, 7
    %v346 = vsub.s32 0, %v345
    %v347 = vrot.slane %v116, %v346
    %v348 = vlaneseq
    %v349 = vshrl.u32 %v348, 7
    %v350 = vsub.s32 0, %v349
    %v351 = vrot.slane %v117, %v350
    %v352 = vlaneseq
    %v353 = vshrl.u32 %v352, 7
    %v354 = vsub.s32 0, %v353
    %v355 = vrot.slane %v118, %v354
    %v356 = vlaneseq
    %v357 = vshrl.u32 %v356, 7
    %v358 = vsub.s32 0, %v357
    %v359 = vrot.slane %v119, %v358
    %v360 = vlaneseq
    %v361 = vshrl.u32 %v360, 7
    %v362 = vsub.s32 0, %v361
    %v363 = vrot.slane %v120, %v362
    %v364 = vlaneseq
    %v365 = vshrl.u32 %v364, 7
    %v366 = vsub.s32 0, %v365
    %v367 = vrot.slane %v121, %v366
    %v368 = vlaneseq
    %v369 = vshrl.u32 %v368, 7
    %v370 = vsub.s32 0, %v369
    %v371 = vrot.slane %v122, %v370
    %v372 = vlaneseq
    %v373 = vshrl.u32 %v372, 7
    %v374 = vsub.s32 0, %v373
    %v375 = vrot.slane %v123, %v374
    %v376 = vlaneseq
    %v377 = vshrl.u32 %v376, 7
    %v378 = vsub.s32 0, %v377
    %v379 = vrot.slane %v124, %v378
    %v380 = vlaneseq
    %v381 = vshrl.u32 %v380, 7
    %v382 = vsub.s32 0, %v381
    %v383 = vrot.slane %v125, %v382
    %v384 = vlaneseq
    %v385 = vshrl.u32 %v384, 7
    %v386 = vsub.s32 0, %v385
    %v387 = vrot.slane %v126, %v386
    %v388 = vlaneseq
    %v389 = vshrl.u32 %v388, 7
    %v390 = vsub.s32 0, %v389
    %v391 = vrot.slane %v127, %v390
    %v392 = vlaneseq
    %v393 = vshrl.u32 %v392, 7
    %v394 = vsub.s32 0, %v393
    %v395 = vrot.slane %v128, %v394
    %v396 = vlaneseq
    %v397 = vshrl.u32 %v396, 7
    %v398 = vsub.s32 0, %v397
    %v399 = vrot.slane %v129, %v398
    %v400 = vlaneseq
    %v401 = vshrl.u32 %v400, 7
    %v402 = vsub.s32 0, %v401
    %v403 = vrot.slane %v130, %v402
    %v404 = vlaneseq
    %v405 = vshrl.u32 %v404, 7
    %v406 = vsub.s32 0, %v405
    %v407 = vrot.slane %v131, %v406
    %v408 = vlaneseq
    %v409 = vshrl.u32 %v408, 7
    %v410 = vsub.s32 0, %v409
    %v411 = vrot.slane %v132, %v410
    %v412 = vlaneseq
    %v413 = vshrl.u32 %v412, 7
    %v414 = vsub.s32 0, %v413
    %v415 = vrot.slane %v133, %v414
    %v416 = vlaneseq
    %v417 = vshrl.u32 %v416, 7
    %v418 = vsub.s32 0, %v417
    %v419 = vrot.slane %v134, %v418
    %v420 = vlaneseq
    %v421 = vshrl.u32 %v420, 7
    %v422 = vsub.s32 0, %v421
    %v423 = vrot.slane %v135, %v422
    %v424 = vlaneseq
    %v425 = vshrl.u32 %v424, 7
    %v426 = vsub.s32 0, %v425
    %v427 = vrot.slane %v136, %v426
    %v428 = vlaneseq
    %v429 = vshrl.u32 %v428, 7
    %v430 = vsub.s32 0, %v429
    %v431 = vrot.slane %v137, %v430
    %v432 = vlaneseq
    %v433 = vshrl.u32 %v432, 7
    %v434 = vsub.s32 0, %v433
    %v435 = vrot.slane %v138, %v434
    %v436 = vlaneseq
    %v437 = vshrl.u32 %v436, 7
    %v438 = vsub.s32 0, %v437
    %v439 = vrot.slane %v139, %v438
    %v440 = vlaneseq
    %v441 = vshrl.u32 %v440, 7
    %v442 = vsub.s32 0, %v441
    %v443 = vrot.slane %v140, %v442
    %v444 = vlaneseq
    %v445 = vshrl.u32 %v444, 7
    %v446 = vsub.s32 0, %v445
    %v447 = vrot.slane %v141, %v446
    %v448 = vlaneseq
    %v449 = vshrl.u32 %v448, 7
    %v450 = vsub.s32 0, %v449
    %v451 = vrot.slane %v142, %v450
    %v452 = vlaneseq
    %v453 = vshrl.u32 %v452, 7
    %v454 = vsub.s32 0, %v453
    %v455 = vrot.slane %v143, %v454
    %v456 = vlaneseq
    %v457 = vshrl.u32 %v456, 7
    %v458 = vsub.s32 0, %v457
    %v459 = vrot.slane %v144, %v458
    %v460 = vlaneseq
    %v461 = vshrl.u32 %v460, 7
    %v462 = vsub.s32 0, %v461
    %v463 = vrot.slane %v145, %v462
    %v464 = vlaneseq
    %v465 = vshrl.u32 %v464, 7
    %v466 = vsub.s32 0, %v465
    %v467 = vrot.slane %v146, %v466
    %v468 = vlaneseq
    %v469 = vshrl.u32 %v468, 7
    %v470 = vsub.s32 0, %v469
    %v471 = vrot.slane %v147, %v470
    %v472 = vlaneseq
    %v473 = vshrl.u32 %v472, 7
    %v474 = vsub.s32 0, %v473
    %v475 = vrot.slane %v148, %v474
    %v476 = vlaneseq
    %v477 = vshrl.u32 %v476, 7
    %v478 = vsub.s32 0, %v477
    %v479 = vrot.slane %v149, %v478
    %v480 = vlaneseq
    %v481 = vshrl.u32 %v480, 7
    %v482 = vsub.s32 0, %v481
    %v483 = vrot.slane %v150, %v482
    %v484 = vlaneseq
    %v485 = vshrl.u32 %v484, 7
    %v486 = vsub.s32 0, %v485
    %v487 = vrot.slane %v151, %v486
    %v488 = vlaneseq
    %v489 = vshrl.u32 %v488, 7
    %v490 = vsub.s32 0, %v489
    %v491 = vrot.slane %v152, %v490
    %v492 = vlaneseq
    %v493 = vshrl.u32 %v492, 7
    %v494 = vsub.s32 0, %v493
    %v495 = vrot.slane %v153, %v494
    %v496 = vlaneseq
    %v497 = vshrl.u32 %v496, 7
    %v498 = vsub.s32 0, %v497
    %v499 = vrot.slane %v154, %v498
    %v500 = vlaneseq
    %v501 = vshrl.u32 %v500, 7
    %v502 = vsub.s32 0, %v501
    %v503 = vrot.slane %v155, %v502
    %v504 = vlaneseq
    %v505 = vshrl.u32 %v504, 7
    %v506 = vsub.s32 0, %v505
    %v507 = vrot.slane %v156, %v506
    %v508 = vlaneseq
    %v509 = vshrl.u32 %v508, 7
    %v510 = vsub.s32 0, %v509
    %v511 = vrot.slane %v157, %v510
    %v512 = vlaneseq
    %v513 = vshrl.u32 %v512, 7
    %v514 = vsub.s32 0, %v513
    %v515 = vrot.slane %v158, %v514
    %v516 = vlaneseq
    %v517 = vshrl.u32 %v516, 7
    %v518 = vsub.s32 0, %v517
    %v519 = vrot.slane %v159, %v518
    %v520 = vlaneseq
    %v521 = vshrl.u32 %v520, 7
    %v522 = vsub.s32 0, %v521
    %v523 = vrot.slane %v160, %v522
    %v524 = vlaneseq
    %v525 = vshrl.u32 %v524, 7
    %v526 = vsub.s32 0, %v525
    %v527 = vrot.slane %v161, %v526
    %v528 = vlaneseq
    %v529 = vshrl.u32 %v528, 7
    %v530 = vsub.s32 0, %v529
    %v531 = vrot.slane %v162, %v530
    %v532 = vlaneseq
    %v533 = vshrl.u32 %v532, 7
    %v534 = vsub.s32 0, %v533
    %v535 = vrot.slane %v163, %v534
    %v536 = vlaneseq
    %v537 = vshrl.u32 %v536, 7
    %v538 = vsub.s32 0, %v537
    %v539 = vrot.slane %v164, %v538
    %v540 = vlaneseq
    %v541 = vshrl.u32 %v540, 7
    %v542 = vsub.s32 0, %v541
    %v543 = vrot.slane %v165, %v542
    %v544 = vlaneseq
    %v545 = vshrl.u32 %v544, 7
    %v546 = vsub.s32 0, %v545
    %v547 = vrot.slane %v166, %v546
    %v548 = vlaneseq
    %v549 = vshrl.u32 %v548, 7
    %v550 = vsub.s32 0, %v549
    %v551 = vrot.slane %v167, %v550
    %v616 = vadd.f32 %v168, %v299
    %v617 = vadd.f32 %v169, %v303
    %v618 = vadd.f32 %v170, %v307
    %v619 = vadd.f32 %v171, %v311
    %v620 = vadd.f32 %v172, %v315
    %v621 = vadd.f32 %v173, %v319
    %v622 = vadd.f32 %v174, %v323
    %v623 = vadd.f32 %v175, %v327
    %v624 = vadd.f32 %v176, %v331
    %v625 = vadd.f32 %v177, %v335
    %v626 = vadd.f32 %v178, %v339
    %v627 = vadd.f32 %v179, %v343
    %v628 = vadd.f32 %v180, %v347
    %v629 = vadd.f32 %v181, %v351
    %v630 = vadd.f32 %v182, %v355
    %v631 = vadd.f32 %v183, %v359
    %v632 = vadd.f32 %v184, %v363
    %v633 = vadd.f32 %v185, %v367
    %v634 = vadd.f32 %v186, %v371
    %v635 = vadd.f32 %v187, %v375
    %v636 = vadd.f32 %v188, %v379
    %v637 = vadd.f32 %v189, %v383
    %v638 = vadd.f32 %v190, %v387
    %v639 = vadd.f32 %v191, %v391
    %v640 = vadd.f32 %v192, %v395
    %v641 = vadd.f32 %v193, %v399
    %v642 = vadd.f32 %v194, %v403
    %v643 = vadd.f32 %v195, %v407
    %v644 = vadd.f32 %v196, %v411
    %v645 = vadd.f32 %v197, %v415
    %v646 = vadd.f32 %v198, %v419
    %v647 = vadd.f32 %v199, %v423
    %v648 = vadd.f32 %v200, %v427
    %v649 = vadd.f32 %v201, %v431
    %v650 = vadd.f32 %v202, %v435
    %v651 = vadd.f32 %v203, %v439
    %v652 = vadd.f32 %v204, %v443
    %v653 = vadd.f32 %v205, %v447
    %v654 = vadd.f32 %v206, %v451
    %v655 = vadd.f32 %v207, %v455
    %v656 = vadd.f32 %v208, %v459
    %v657 = vadd.f32 %v209, %v463
    %v658 = vadd.f32 %v210, %v467
    %v659 = vadd.f32 %v211, %v471
    %v660 = vadd.f32 %v212, %v475
    %v661 = vadd.f32 %v213, %v479
    %v662 = vadd.f32 %v214, %v483
    %v663 = vadd.f32 %v215, %v487
    %v664 = vadd.f32 %v216, %v491
    %v665 = vadd.f32 %v217, %v495
    %v666 = vadd.f32 %v218, %v499
    %v667 = vadd.f32 %v219, %v503
    %v668 = vadd.f32 %v220, %v507
    %v669 = vadd.f32 %v221, %v511
    %v670 = vadd.f32 %v222, %v515
    %v671 = vadd.f32 %v223, %v519
    %v672 = vadd.f32 %v224, %v523
    %v673 = vadd.f32 %v225, %v527
    %v674 = vadd.f32 %v226, %v531
    %v675 = vadd.f32 %v227, %v535
    %v676 = vadd.f32 %v228, %v539
    %v677 = vadd.f32 %v229, %v543
    %v678 = vadd.f32 %v230, %v547
    %v679 = vadd.f32 %v231, %v551
    %680 = vst [vmem:[#allocation7] sm:$0xf] %v616
    %681 = vst [vmem:[#allocation7 + $0x4] sm:$0xf] %v617
    %682 = vst [vmem:[#allocation7 + $0x8] sm:$0xf] %v618
    %683 = vst [vmem:[#allocation7 + $0xc] sm:$0xf] %v619
    %684 = vst [vmem:[#allocation7 + $0x10] sm:$0xf] %v620
    %685 = vst [vmem:[#allocation7 + $0x14] sm:$0xf] %v621
    %686 = vst [vmem:[#allocation7 + $0x18] sm:$0xf] %v622
    %687 = vst [vmem:[#allocation7 + $0x1c] sm:$0xf] %v623
    %688 = vst [vmem:[#allocation7 + $0x20] sm:$0xf] %v624
    %689 = vst [vmem:[#allocation7 + $0x24] sm:$0xf] %v625
    %690 = vst [vmem:[#allocation7 + $0x28] sm:$0xf] %v626
    %691 = vst [vmem:[#allocation7 + $0x2c] sm:$0xf] %v627
    %692 = vst [vmem:[#allocation7 + $0x30] sm:$0xf] %v628
    %693 = vst [vmem:[#allocation7 + $0x34] sm:$0xf] %v629
    %694 = vst [vmem:[#allocation7 + $0x38] sm:$0xf] %v630
    %695 = vst [vmem:[#allocation7 + $0x3c] sm:$0xf] %v631
    %696 = vst [vmem:[#allocation7 + $0x40] sm:$0xf] %v632
    %697 = vst [vmem:[#allocation7 + $0x44] sm:$0xf] %v633
    %698 = vst [vmem:[#allocation7 + $0x48] sm:$0xf] %v634
    %699 = vst [vmem:[#allocation7 + $0x4c] sm:$0xf] %v635
    %700 = vst [vmem:[#allocation7 + $0x50] sm:$0xf] %v636
    %701 = vst [vmem:[#allocation7 + $0x54] sm:$0xf] %v637
    %702 = vst [vmem:[#allocation7 + $0x58] sm:$0xf] %v638
    %703 = vst [vmem:[#allocation7 + $0x5c] sm:$0xf] %v639
    %704 = vst [vmem:[#allocation7 + $0x60] sm:$0xf] %v640
    %705 = vst [vmem:[#allocation7 + $0x64] sm:$0xf] %v641
    %706 = vst [vmem:[#allocation7 + $0x68] sm:$0xf] %v642
    %707 = vst [vmem:[#allocation7 + $0x6c] sm:$0xf] %v643
    %708 = vst [vmem:[#allocation7 + $0x70] sm:$0xf] %v644
    %709 = vst [vmem:[#allocation7 + $0x74] sm:$0xf] %v645
    %710 = vst [vmem:[#allocation7 + $0x78] sm:$0xf] %v646
    %711 = vst [vmem:[#allocation7 + $0x7c] sm:$0xf] %v647
    %712 = vst [vmem:[#allocation7 + $0x80] sm:$0xf] %v648
    %713 = vst [vmem:[#allocation7 + $0x84] sm:$0xf] %v649
    %714 = vst [vmem:[#allocation7 + $0x88] sm:$0xf] %v650
    %715 = vst [vmem:[#allocation7 + $0x8c] sm:$0xf] %v651
    %716 = vst [vmem:[#allocation7 + $0x90] sm:$0xf] %v652
    %717 = vst [vmem:[#allocation7 + $0x94] sm:$0xf] %v653
    %718 = vst [vmem:[#allocation7 + $0x98] sm:$0xf] %v654
    %719 = vst [vmem:[#allocation7 + $0x9c] sm:$0xf] %v655
    %720 = vst [vmem:[#allocation7 + $0xa0] sm:$0xf] %v656
    %721 = vst [vmem:[#allocation7 + $0xa4] sm:$0xf] %v657
    %722 = vst [vmem:[#allocation7 + $0xa8] sm:$0xf] %v658
    %723 = vst [vmem:[#allocation7 + $0xac] sm:$0xf] %v659
    %724 = vst [vmem:[#allocation7 + $0xb0] sm:$0xf] %v660
    %725 = vst [vmem:[#allocation7 + $0xb4] sm:$0xf] %v661
    %726 = vst [vmem:[#allocation7 + $0xb8] sm:$0xf] %v662
    %727 = vst [vmem:[#allocation7 + $0xbc] sm:$0xf] %v663
    %728 = vst [vmem:[#allocation7 + $0xc0] sm:$0xf] %v664
    %729 = vst [vmem:[#allocation7 + $0xc4] sm:$0xf] %v665
    %730 = vst [vmem:[#allocation7 + $0xc8] sm:$0xf] %v666
    %731 = vst [vmem:[#allocation7 + $0xcc] sm:$0xf] %v667
    %732 = vst [vmem:[#allocation7 + $0xd0] sm:$0xf] %v668
    %733 = vst [vmem:[#allocation7 + $0xd4] sm:$0xf] %v669
    %734 = vst [vmem:[#allocation7 + $0xd8] sm:$0xf] %v670
    %735 = vst [vmem:[#allocation7 + $0xdc] sm:$0xf] %v671
    %736 = vst [vmem:[#allocation7 + $0xe0] sm:$0xf] %v672
    %737 = vst [vmem:[#allocation7 + $0xe4] sm:$0xf] %v673
    %738 = vst [vmem:[#allocation7 + $0xe8] sm:$0xf] %v674
    %739 = vst [vmem:[#allocation7 + $0xec] sm:$0xf] %v675
    %740 = vst [vmem:[#allocation7 + $0xf0] sm:$0xf] %v676
    %741 = vst [vmem:[#allocation7 + $0xf4] sm:$0xf] %v677
    %742 = vst [vmem:[#allocation7 + $0xf8] sm:$0xf] %v678
    %743 = vst [vmem:[#allocation7 + $0xfc] sm:$0xf] %v679
    // Predicated region
    $region18: #{tpu_custom_call.1} parent=1 // pred_check
      _
    $region19: #{tpu_custom_call.1} parent=1 // pred_check_branch
      %745 = sbr.rel (0) target = $region21
    $region20: #{tpu_custom_call.1} parent=1 // pred_region
      %s747 = ssub.s32 4096, 4096
      %748 = vsyncadd [#allocation4], %s747
      %s749 = sshll.u32 [#allocation7], 4
      %s750 = int_to_ptr.vmem [resolvable:$true] %s749
      %755 = dma.vmem_to_hbm [thread:$0]  %s750, 4096, %s2, [#allocation4], 64, 64, 4
    $region21: #{tpu_custom_call.1} parent=1 // pred_fallthru
      _
    // Predicated region
    $region22: #{tpu_custom_call.1} parent=1 // pred_check
      _
    $region23: #{tpu_custom_call.1} parent=1 // pred_check_branch
      %757 = sbr.rel (0) target = $region25
    $region24: #{tpu_custom_call.1} parent=1 // pred_region
      %758 = dma.done [#allocation4], 4096
    $region25: #{tpu_custom_call.1} parent=1 // pred_fallthru
      _
    %759 = vsyncpa [#allocation3], 1
    %760 = vsyncpa [#allocation6], 1
    %761 = vsyncpa [#allocation4], 1

</llo_original>
